<compile_context>
chip_gen: v7x
topology: tpu7x:2x2x1
jax: 0.10.0
libtpu: 0.0.40
codegen_flags: <defaults>
</compile_context>

<pallas_src>
import functools

import jax
import jax.numpy as jnp
from jax import lax
from jax.experimental import pallas as pl
from jax.experimental.pallas import tpu as pltpu


def _additive_rbf_kernel(inv_l_sq_ref, x1_ref, x2n2_ref, x1_sq_ref, x2_sq_ref,
                         o_ref, *, num_kernels, use_bf16_exp):
    # inv_l_sq_ref : (num_kernels,) f32 in SMEM  ->  1 / lengthscale_k^2
    # x1_ref       : (tn, D)  VMEM tile
    # x2n2_ref     : (tm, D)  VMEM tile, pre-scaled by -2 in the wrapper
    # x1_sq_ref    : (tn, 1)  VMEM tile, precomputed ||x1||^2 (hoisted)
    # x2_sq_ref    : (1, tm)  VMEM tile, precomputed ||x2||^2 (hoisted)
    # o_ref        : (tn, tm) VMEM output tile
    x1 = x1_ref[...]
    x2n2 = x2n2_ref[...]

    # (-2 * x1 @ x2^T) as a direct contraction over D -> no XLU transpose;
    # the -2 was folded into x2 in the wrapper (M*D cost instead of N*M).
    xx = lax.dot_general(x1, x2n2, (((1,), (1,)), ((), ())),
                         preferred_element_type=jnp.float32)  # (tn, tm) on MXU

    # Squared pairwise distances; clamp guards tiny negatives from rounding.
    base_sq = jnp.maximum(x1_sq_ref[...] + x2_sq_ref[...] + xx, 0.0)

    def term(scale):
        arg = -scale * base_sq
        if use_bf16_exp:
            # ~1e-3 relative error; roughly doubles EUP throughput on v6e/v7x.
            return jnp.exp(arg.astype(jnp.bfloat16)).astype(jnp.float32)
        return jnp.exp(arg)

    # Initialize with the k=0 term (no zeros + add).
    acc = term(inv_l_sq_ref[0])
    if num_kernels <= 8:
        for k in range(1, num_kernels):
            acc = acc + term(inv_l_sq_ref[k])
    else:
        # Bounded live ranges for many constituent kernels (EUP serializes
        # the exps anyway, so nothing is lost vs. the static unroll).
        def body(k, a):
            return a + term(inv_l_sq_ref[k])
        acc = lax.fori_loop(1, num_kernels, body, acc)

    o_ref[...] = acc.astype(o_ref.dtype)


def _round_up(x, m):
    return ((x + m - 1) // m) * m


def additive_kernel(x1, x2, lengthscales, *, max_tile_n=512, max_tile_m=512,
                    out_dtype=jnp.float32, use_bf16_exp=False):
    """AdditiveKernel of len(lengthscales) RBF kernels. x1:(N,D), x2:(M,D).

    Tiles are picked adaptively: 128-multiples, capped at max_tile_* (default
    512; fits the 32 MiB scoped VMEM on every generation incl. v7x).  Ragged
    N/M are handled via zero-padding + final slice.  out_dtype=bf16 halves
    output writeback bytes (useful on HBM-bound v5e); use_bf16_exp doubles
    EUP throughput on v6e/v7x.  Both trade ~1e-3 relative accuracy.
    """
    N, D = x1.shape
    M, D2 = x2.shape
    assert D == D2, "x1 and x2 must have the same number of dimensions!"
    num_kernels = int(lengthscales.shape[0])

    x1f = x1.astype(jnp.float32)
    x2f = x2.astype(jnp.float32)

    # Mean-center to bound norms: pairwise differences (and hence the kernel)
    # are invariant, but the ||a||^2+||b||^2-2ab expansion loses far less
    # precision for clustered / large-magnitude data.
    center = (jnp.sum(x1f, axis=0) + jnp.sum(x2f, axis=0)) / float(N + M)
    x1f = x1f - center[None, :]
    x2f = x2f - center[None, :]

    # Adaptive tile selection (128-aligned, capped).
    tile_n = min(max_tile_n, _round_up(N, 128))
    tile_m = min(max_tile_m, _round_up(M, 128))
    # Ensure >= 2 grid steps on at least one "parallel" axis so v7x can shard
    # across its 2 TensorCores (prefer splitting M: lane-dense output stores).
    if pl.cdiv(N, tile_n) == 1 and pl.cdiv(M, tile_m) == 1:
        if tile_m >= 256:
            tile_m //= 2
        elif tile_n >= 256:
            tile_n //= 2

    n_tiles = pl.cdiv(N, tile_n)
    m_tiles = pl.cdiv(M, tile_m)
    N_pad = n_tiles * tile_n
    M_pad = m_tiles * tile_m
    if N_pad != N:
        x1f = jnp.pad(x1f, ((0, N_pad - N), (0, 0)))
    if M_pad != M:
        x2f = jnp.pad(x2f, ((0, M_pad - M), (0, 0)))

    # Hoisted to the wrapper (constant across all grid steps):
    #   ||x1||^2 column, ||x2||^2 row, -2*x2 matmul operand, per-kernel 1/l^2.
    x1_sq = jnp.sum(x1f * x1f, axis=-1, keepdims=True)          # (N_pad, 1)
    x2_sq = jnp.sum(x2f * x2f, axis=-1)[None, :]                 # (1, M_pad)
    x2_neg2 = -2.0 * x2f                                         # (M_pad, D)
    inv_l_sq = 1.0 / (lengthscales.astype(jnp.float32) ** 2)     # (num_kernels,)

    kernel = functools.partial(_additive_rbf_kernel,
                               num_kernels=num_kernels,
                               use_bf16_exp=use_bf16_exp)

    cost = pl.CostEstimate(
        flops=2 * N_pad * M_pad * D + (3 + 2 * num_kernels) * N_pad * M_pad,
        transcendentals=num_kernels * N_pad * M_pad,
        bytes_accessed=4 * (N_pad * D + M_pad * D + N_pad + M_pad)
        + jnp.dtype(out_dtype).itemsize * N_pad * M_pad,
    )

    out = pl.pallas_call(
        kernel,
        out_shape=jax.ShapeDtypeStruct((N_pad, M_pad), out_dtype),
        grid_spec=pl.GridSpec(
            grid=(n_tiles, m_tiles),
            in_specs=[
                # per-kernel 1/l^2 scalars live in SMEM (scalar path)
                pl.BlockSpec(memory_space=pltpu.MemorySpace.SMEM),
                pl.BlockSpec((tile_n, D), lambda i, j: (i, 0)),
                pl.BlockSpec((tile_m, D), lambda i, j: (j, 0)),
                pl.BlockSpec((tile_n, 1), lambda i, j: (i, 0)),
                pl.BlockSpec((1, tile_m), lambda i, j: (0, j)),
            ],
            out_specs=pl.BlockSpec((tile_n, tile_m), lambda i, j: (i, j)),
        ),
        compiler_params=pltpu.CompilerParams(
            dimension_semantics=("parallel", "parallel"),
            vmem_limit_bytes=32 * 1024 * 1024,
        ),
        cost_estimate=cost,
    )(inv_l_sq, x1f, x2_neg2, x1_sq, x2_sq)

    if N_pad != N or M_pad != M:
        out = out[:N, :M]
    return out


def _reference(x1, x2, lengthscales):
    out = jnp.zeros((x1.shape[0], x2.shape[0]), jnp.float32)
    for k in range(lengthscales.shape[0]):
        diff = (x1[:, None, :] - x2[None, :, :]) / lengthscales[k]
        out = out + jnp.exp(-jnp.sum(diff * diff, axis=-1))
    return out


if __name__ == "__main__":
    key = jax.random.PRNGKey(0)
    # Ragged shapes (not tile multiples) to exercise padding + adaptive tiles.
    N, M, D = 200, 160, 8
    k1, k2 = jax.random.split(key)
    x1 = jax.random.normal(k1, (N, D), dtype=jnp.float32)
    x2 = jax.random.normal(k2, (M, D), dtype=jnp.float32)

    # --- AdditiveKernel of 2 RBF kernels (static-unroll path) ---------------
    # Each constituent kernel has log_lengthscale of shape (1, 1, 1);
    # deterministic init log_lengthscale = 0.0 and 0.5.
    log_lengthscales = jnp.array([0.0, 0.5], dtype=jnp.float32)
    lengthscales = jnp.exp(log_lengthscales)  # Kernel.lengthscale property

    out = additive_kernel(x1, x2, lengthscales)
    out = jax.block_until_ready(out)
    ref = _reference(x1, x2, lengthscales)
    assert out.shape == (N, M)
    assert jnp.allclose(out, ref, atol=1e-4, rtol=1e-4)

    # --- Many constituent kernels (lax.fori_loop path) ----------------------
    log_ls_many = jnp.linspace(-0.5, 1.0, 10).astype(jnp.float32)
    ls_many = jnp.exp(log_ls_many)
    out_many = jax.block_until_ready(additive_kernel(x1, x2, ls_many))
    ref_many = _reference(x1, x2, ls_many)
    assert jnp.allclose(out_many, ref_many, atol=1e-4, rtol=1e-4)

    print("KERNEL_OK")
</pallas_src>

<mosaic_0001>
module attributes {stable_mosaic.version = 11 : i64} {
  func.func @_additive_rbf_kernel(%arg0: i32, %arg1: i32, %arg2: memref<2xf32, #tpu.memory_space<smem>>, %arg3: memref<256x8xf32, #tpu.memory_space<vmem>>, %arg4: memref<128x8xf32, #tpu.memory_space<vmem>>, %arg5: memref<256x1xf32, #tpu.memory_space<vmem>>, %arg6: memref<1x128xf32, #tpu.memory_space<vmem>>, %arg7: memref<256x128xf32, #tpu.memory_space<vmem>>) attributes {dimension_semantics = [#tpu.dimension_semantics<parallel>, #tpu.dimension_semantics<parallel>], iteration_bounds = array<i64: 1, 2>, scalar_prefetch = 0 : i64, scratch_operands = 0 : i64, tpu.core_type = #tpu.core_type<tc>, window_params = [{transform_indices = @transform_0, window_bounds = array<i64: 2>}, {transform_indices = @transform_1, window_bounds = array<i64: 256, 8>}, {transform_indices = @transform_2, window_bounds = array<i64: 128, 8>}, {transform_indices = @transform_3, window_bounds = array<i64: 256, 1>}, {transform_indices = @transform_4, window_bounds = array<i64: 1, 128>}, {transform_indices = @transform_5, window_bounds = array<i64: 256, 128>}]} {
    %c0 = arith.constant 0 : index
    %c0_0 = arith.constant 0 : index
    %0 = vector.load %arg3[%c0, %c0_0] : memref<256x8xf32, #tpu.memory_space<vmem>>, vector<256x8xf32>
    %c0_1 = arith.constant 0 : index
    %c0_2 = arith.constant 0 : index
    %1 = vector.load %arg4[%c0_1, %c0_2] : memref<128x8xf32, #tpu.memory_space<vmem>>, vector<128x8xf32>
    %cst = arith.constant dense<0.000000e+00> : vector<256x128xf32>
    %2 = tpu.matmul %0, %1, %cst {dimension_numbers = #tpu.dot_dimension_numbers<[1], [1], [0], [0], [0, 0, 1, 0], [], []>} : vector<256x8xf32>, vector<128x8xf32>, vector<256x128xf32> -> vector<256x128xf32>
    %c0_3 = arith.constant 0 : index
    %c0_4 = arith.constant 0 : index
    %3 = vector.load %arg5[%c0_3, %c0_4] : memref<256x1xf32, #tpu.memory_space<vmem>>, vector<256x1xf32>
    %c0_5 = arith.constant 0 : index
    %c0_6 = arith.constant 0 : index
    %4 = vector.load %arg6[%c0_5, %c0_6] : memref<1x128xf32, #tpu.memory_space<vmem>>, vector<1x128xf32>
    %5 = vector.broadcast %3 : vector<256x1xf32> to vector<256x128xf32>
    %6 = vector.broadcast %4 : vector<1x128xf32> to vector<256x128xf32>
    %7 = arith.addf %5, %6 : vector<256x128xf32>
    %8 = arith.addf %7, %2 : vector<256x128xf32>
    %cst_7 = arith.constant 0.000000e+00 : f32
    %9 = vector.broadcast %cst_7 : f32 to vector<256x128xf32>
    %10 = arith.maximumf %8, %9 : vector<256x128xf32>
    %c0_8 = arith.constant 0 : index
    %11 = memref.load %arg2[%c0_8] : memref<2xf32, #tpu.memory_space<smem>>
    %cst_9 = arith.constant 0.000000e+00 : f32
    %12 = arith.subf %cst_9, %11 : f32
    %13 = vector.broadcast %12 : f32 to vector<256x128xf32>
    %14 = arith.mulf %13, %10 : vector<256x128xf32>
    %15 = math.exp %14 : vector<256x128xf32>
    %c1 = arith.constant 1 : index
    %16 = memref.load %arg2[%c1] : memref<2xf32, #tpu.memory_space<smem>>
    %cst_10 = arith.constant 0.000000e+00 : f32
    %17 = arith.subf %cst_10, %16 : f32
    %18 = vector.broadcast %17 : f32 to vector<256x128xf32>
    %19 = arith.mulf %18, %10 : vector<256x128xf32>
    %20 = math.exp %19 : vector<256x128xf32>
    %21 = arith.addf %15, %20 : vector<256x128xf32>
    %c0_11 = arith.constant 0 : index
    %c0_12 = arith.constant 0 : index
    %22 = vector.load %arg7[%c0_11, %c0_12] : memref<256x128xf32, #tpu.memory_space<vmem>>, vector<256x128xf32>
    tpu.vector_store %arg7[%c0_11, %c0_12], %21 {strides = array<i32>} : memref<256x128xf32, #tpu.memory_space<vmem>>, vector<256x128xf32>,
    return
  }
  func.func @transform_0(%arg0: i32, %arg1: i32) -> i32 {
    %c0_i32 = arith.constant 0 : i32
    %c0_i32_0 = arith.constant 0 : i32
    return %c0_i32 : i32
  }
  func.func @transform_1(%arg0: i32, %arg1: i32) -> (i32, i32) {
    %c0_i32 = arith.constant 0 : i32
    %c0_i32_0 = arith.constant 0 : i32
    return %arg0, %c0_i32 : i32, i32
  }
  func.func @transform_2(%arg0: i32, %arg1: i32) -> (i32, i32) {
    %c0_i32 = arith.constant 0 : i32
    %c0_i32_0 = arith.constant 0 : i32
    return %arg1, %c0_i32 : i32, i32
  }
  func.func @transform_3(%arg0: i32, %arg1: i32) -> (i32, i32) {
    %c0_i32 = arith.constant 0 : i32
    %c0_i32_0 = arith.constant 0 : i32
    return %arg0, %c0_i32 : i32, i32
  }
  func.func @transform_4(%arg0: i32, %arg1: i32) -> (i32, i32) {
    %c0_i32 = arith.constant 0 : i32
    %c0_i32_0 = arith.constant 0 : i32
    return %c0_i32, %arg1 : i32, i32
  }
  func.func @transform_5(%arg0: i32, %arg1: i32) -> (i32, i32) {
    %c0_i32 = arith.constant 0 : i32
    return %arg0, %arg1 : i32, i32
  }
}

</mosaic_0001>

<llo_original>
// kernel: tpu_custom_call.1
$region0: #{tpu_custom_call.1}
  #allocation0 [shape = 'u32[]', space=smem, size = 0x4, offset = 0x4, fixed_abs, tag = 'smem constant byte address 0x4 - core index']
  #allocation1 [shape = 'u32[144,128]{1,0:T(1,128)}', space=vmem, size = 0x12000, scoped, tag = 'internal scratch']
  %s0 = inlined_call_operand.vmem [shape: f32[2], index: 0, kind: input, shape index: {}]
  %s1 = inlined_call_operand.vmem [shape: f32[256,8], index: 1, kind: input, shape index: {}]
  %s2 = inlined_call_operand.vmem [shape: f32[256,8], index: 2, kind: input, shape index: {}]
  %s3 = inlined_call_operand.vmem [shape: f32[256,1], index: 3, kind: input, shape index: {}]
  %s4 = inlined_call_operand.vmem [shape: f32[1,256], index: 4, kind: input, shape index: {}]
  %s5 = inlined_call_operand.hbm [shape: f32[256,256], index: 5, kind: output, shape index: {}]
  %s6 = sld [smem:[#allocation0]]
  $region57: #{tpu_custom_call.1} parent=0
    _
  %s8 = ssub.s32 1, %s6
  %s9 = scalar_select 0, %s8, %s6
  $region1: #{tpu_custom_call.1} parent=0
    #allocation2 [shape = 'u8[512]{0}', space=smem, size = 0x200, scoped, tag = 'input window, operand 0, single buffered']
    #allocation3 [shape = 's32[2]{0}', space=sflag, size = 0x8, scoped, tag = 'scoped memory for tpu_custom_call.1']
    #allocation4 [shape = 's32[2]{0}', space=sflag, size = 0x8, scoped, tag = 'scoped memory for tpu_custom_call.1']
    #allocation5 [shape = 'u8[262144]{0}', space=vmem, size = 0x40000, scoped, tag = 'output window, operand 0']
    %10 = vsyncpa [#allocation4], 0
    %11 = vsyncpa [#allocation3], 0
    %s12 = scalar_lea.sflag [#allocation3], 1
    %13 = vsyncpa %s12, 0
    loop: start=0, step=1, limit=4
    $region2: #{tpu_custom_call.1} parent=1 // loop_pre_header
      _
    $region3: #{tpu_custom_call.1} parent=1 // loop_header
      %s15 = sphi 0, %s19
      %p16 = scmp.ge.s32.totalorder %s15, 4
      %s22 = sphi 0, %s34
      %s23 = sphi 0, %s30
      %s24 = sphi 0, %s22
      %s25 = sphi 0, %s23
      %s26 = sphi 0, %s24
      %s27 = sphi 0, %s25
      %s35 = sphi 0, %s35
      %s37 = sphi 0, %s35
      %s38 = sphi 0, %s37
      %s52 = sphi 0, %s38
      %s58 = sphi 0, %s60
      %s61 = sphi 0, %s58
      %s62 = sphi 0, %s61
      %s78 = sphi 0, %s62
      %s84 = sphi 0, %s86
      %s87 = sphi 0, %s84
      %s88 = sphi 0, %s87
      %s104 = sphi 0, %s88
      %s110 = sphi 0, %s112
      %s113 = sphi 0, %s110
      %s114 = sphi 0, %s113
      %s130 = sphi 0, %s114
      %s136 = sphi 0, %s138
      %s139 = sphi 0, %s136
      %s140 = sphi 0, %s139
      %s156 = sphi 0, %s140
      %s164 = sphi 0, %s166
      %s167 = sphi 0, %s164
      %s168 = sphi 0, %s167
      %s184 = sphi 0, %s168
    $region4: #{tpu_custom_call.1} parent=1 // loop_header_branch
      %18 = sbr.rel (%p16) target = $region8
    $region5: #{tpu_custom_call.1} parent=1 // loop_body
      %s20 = ssub.s32 %s15, 1
      %s21 = ssub.s32 %s15, 2
      %s28 = sadd.s32 1, %s23
      %p29 = scmp.ge.s32.totalorder %s28, 2
      %s30 = scalar_select %p29, 0, %s28
      %s31 = sadd.s32 1, %s22
      %s32 = scalar_select %p29, %s31, %s22
      %p33 = scmp.ge.s32.totalorder %s32, 1
      %s34 = scalar_select %p33, 0, %s32
      %s36 = sadd.s32 %s35, 1
      %p39 = scmp.eq.s32.totalorder %s15, 1
      %p40 = scmp.ne.s32.totalorder %s35, %s37
      %p41 = scmp.eq.s32.totalorder %s15, 0
      %p42 = por %p40, %p41
      %p43 = scmp.ne.s32.totalorder %s35, %s37
      %p44 = scmp.eq.s32.totalorder %s20, 1
      %p45 = por %p43, %p44
      %p46 = scmp.ne.s32.totalorder %s37, %s38
      %p47 = scmp.eq.s32.totalorder %s20, 0
      %p48 = por %p46, %p47
      %p49 = scmp.ne.s32.totalorder %s37, %s38
      %p50 = scmp.eq.s32.totalorder %s21, 1
      %p51 = por %p49, %p50
      %p53 = scmp.ne.s32.totalorder %s38, %s52
      %p54 = scmp.eq.s32.totalorder %s21, 0
      %p55 = por %p53, %p54
      %s56 = ssub.s32 %s22, %s34
      %p57 = scmp.eq.s32.totalorder %s56, 0
      %s59 = sadd.s32 %s58, 1
      %s60 = scalar_select %p57, %s58, %s59
      %p63 = pneg %p57
      %p64 = scmp.eq.s32.totalorder %s15, 1
      %p65 = por %p63, %p64
      %p66 = scmp.ne.s32.totalorder %s58, %s61
      %p67 = scmp.eq.s32.totalorder %s15, 0
      %p68 = por %p66, %p67
      %p69 = scmp.ne.s32.totalorder %s58, %s61
      %p70 = scmp.eq.s32.totalorder %s20, 1
      %p71 = por %p69, %p70
      %p72 = scmp.ne.s32.totalorder %s61, %s62
      %p73 = scmp.eq.s32.totalorder %s20, 0
      %p74 = por %p72, %p73
      %p75 = scmp.ne.s32.totalorder %s61, %s62
      %p76 = scmp.eq.s32.totalorder %s21, 1
      %p77 = por %p75, %p76
      %p79 = scmp.ne.s32.totalorder %s62, %s78
      %p80 = scmp.eq.s32.totalorder %s21, 0
      %p81 = por %p79, %p80
      %s82 = ssub.s32 %s23, %s30
      %p83 = scmp.eq.s32.totalorder %s82, 0
      %s85 = sadd.s32 %s84, 1
      %s86 = scalar_select %p83, %s84, %s85
      %p89 = pneg %p83
      %p90 = scmp.eq.s32.totalorder %s15, 1
      %p91 = por %p89, %p90
      %p92 = scmp.ne.s32.totalorder %s84, %s87
      %p93 = scmp.eq.s32.totalorder %s15, 0
      %p94 = por %p92, %p93
      %p95 = scmp.ne.s32.totalorder %s84, %s87
      %p96 = scmp.eq.s32.totalorder %s20, 1
      %p97 = por %p95, %p96
      %p98 = scmp.ne.s32.totalorder %s87, %s88
      %p99 = scmp.eq.s32.totalorder %s20, 0
      %p100 = por %p98, %p99
      %p101 = scmp.ne.s32.totalorder %s87, %s88
      %p102 = scmp.eq.s32.totalorder %s21, 1
      %p103 = por %p101, %p102
      %p105 = scmp.ne.s32.totalorder %s88, %s104
      %p106 = scmp.eq.s32.totalorder %s21, 0
      %p107 = por %p105, %p106
      %s108 = ssub.s32 %s22, %s34
      %p109 = scmp.eq.s32.totalorder %s108, 0
      %s111 = sadd.s32 %s110, 1
      %s112 = scalar_select %p109, %s110, %s111
      %p115 = pneg %p109
      %p116 = scmp.eq.s32.totalorder %s15, 1
      %p117 = por %p115, %p116
      %p118 = scmp.ne.s32.totalorder %s110, %s113
      %p119 = scmp.eq.s32.totalorder %s15, 0
      %p120 = por %p118, %p119
      %p121 = scmp.ne.s32.totalorder %s110, %s113
      %p122 = scmp.eq.s32.totalorder %s20, 1
      %p123 = por %p121, %p122
      %p124 = scmp.ne.s32.totalorder %s113, %s114
      %p125 = scmp.eq.s32.totalorder %s20, 0
      %p126 = por %p124, %p125
      %p127 = scmp.ne.s32.totalorder %s113, %s114
      %p128 = scmp.eq.s32.totalorder %s21, 1
      %p129 = por %p127, %p128
      %p131 = scmp.ne.s32.totalorder %s114, %s130
      %p132 = scmp.eq.s32.totalorder %s21, 0
      %p133 = por %p131, %p132
      %s134 = ssub.s32 %s23, %s30
      %p135 = scmp.eq.s32.totalorder %s134, 0
      %s137 = sadd.s32 %s136, 1
      %s138 = scalar_select %p135, %s136, %s137
      %p141 = pneg %p135
      %p142 = scmp.eq.s32.totalorder %s15, 1
      %p143 = por %p141, %p142
      %p144 = scmp.ne.s32.totalorder %s136, %s139
      %p145 = scmp.eq.s32.totalorder %s15, 0
      %p146 = por %p144, %p145
      %p147 = scmp.ne.s32.totalorder %s136, %s139
      %p148 = scmp.eq.s32.totalorder %s20, 1
      %p149 = por %p147, %p148
      %p150 = scmp.ne.s32.totalorder %s139, %s140
      %p151 = scmp.eq.s32.totalorder %s20, 0
      %p152 = por %p150, %p151
      %p153 = scmp.ne.s32.totalorder %s139, %s140
      %p154 = scmp.eq.s32.totalorder %s21, 1
      %p155 = por %p153, %p154
      %p157 = scmp.ne.s32.totalorder %s140, %s156
      %p158 = scmp.eq.s32.totalorder %s21, 0
      %p159 = por %p157, %p158
      %s160 = ssub.s32 %s22, %s34
      %s161 = ssub.s32 %s23, %s30
      %s162 = sor.u32 %s160, %s161
      %p163 = scmp.eq.s32.totalorder %s162, 0
      %s165 = sadd.s32 %s164, 1
      %s166 = scalar_select %p163, %s164, %s165
      %p169 = pneg %p163
      %p170 = scmp.eq.s32.totalorder %s15, 1
      %p171 = por %p169, %p170
      %p172 = scmp.ne.s32.totalorder %s164, %s167
      %p173 = scmp.eq.s32.totalorder %s15, 0
      %p174 = por %p172, %p173
      %p175 = scmp.ne.s32.totalorder %s164, %s167
      %p176 = scmp.eq.s32.totalorder %s20, 1
      %p177 = por %p175, %p176
      %p178 = scmp.ne.s32.totalorder %s167, %s168
      %p179 = scmp.eq.s32.totalorder %s20, 0
      %p180 = por %p178, %p179
      %p181 = scmp.ne.s32.totalorder %s167, %s168
      %p182 = scmp.eq.s32.totalorder %s21, 1
      %p183 = por %p181, %p182
      %p185 = scmp.ne.s32.totalorder %s168, %s184
      %p186 = scmp.eq.s32.totalorder %s21, 0
      %p187 = por %p185, %p186
      %p188 = scmp.le.s32.totalorder 1, %s15
      %p189 = scmp.lt.s32.totalorder %s15, 3
      %p190 = pnand %p188, %p189
      %p191 = pneg %p190
      // Predicated region
      $region9: #{tpu_custom_call.1} parent=5 // pred_check
        _
      $region10: #{tpu_custom_call.1} parent=5 // pred_check_branch
        %193 = sbr.rel (%p190) target = $region12
      $region11: #{tpu_custom_call.1} parent=5 // pred_region
        %s194 = ssub.s32 %s15, 1
        // Predicated region
        $region13: #{tpu_custom_call.1} parent=11 // pred_check
          %p195 = pneg %p48
        $region14: #{tpu_custom_call.1} parent=11 // pred_check_branch
          %197 = sbr.rel (%p195) target = $region16
        $region15: #{tpu_custom_call.1} parent=11 // pred_region
          %s199 = ssub.s32 16, 16
          %200 = vsyncadd [#allocation4], %s199
          %s202 = sshll.u32 %s0, 4
          %s203 = int_to_ptr.vmem [resolvable:$true] %s202
          %205 = dma.vmem_to_smem %s203, 16, [#allocation2], [#allocation4]
        $region16: #{tpu_custom_call.1} parent=11 // pred_fallthru
          _
        // Predicated region
        $region17: #{tpu_custom_call.1} parent=11 // pred_check
          %p206 = pneg %p74
        $region18: #{tpu_custom_call.1} parent=11 // pred_check_branch
          %208 = sbr.rel (%p206) target = $region20
        $region19: #{tpu_custom_call.1} parent=11 // pred_region
          %s209 = smul.u32 32, %s24
          %p210 = scmp.lt.s32.totalorder %s209, 31
          %s211 = scalar_select %p210, %s209, 31
          %s212 = smul.addr %s211, 8
          %s213 = scalar_lea.vmem %s1, %s212
          %s214 = smul.u32 32, %s24
        $region20: #{tpu_custom_call.1} parent=11 // pred_fallthru
          _
        // Predicated region
        $region21: #{tpu_custom_call.1} parent=11 // pred_check
          %p215 = pneg %p126
        $region22: #{tpu_custom_call.1} parent=11 // pred_check_branch
          %217 = sbr.rel (%p215) target = $region24
        $region23: #{tpu_custom_call.1} parent=11 // pred_region
          %s218 = smul.u32 32, %s24
          %p219 = scmp.lt.s32.totalorder %s218, 31
          %s220 = scalar_select %p219, %s218, 31
          %s221 = smul.addr %s220, 8
          %s222 = scalar_lea.vmem %s3, %s221
          %s223 = smul.u32 32, %s24
        $region24: #{tpu_custom_call.1} parent=11 // pred_fallthru
          _
      $region12: #{tpu_custom_call.1} parent=5 // pred_fallthru
        _
      %p224 = scmp.lt.s32.totalorder %s15, 2
      // Predicated region
      $region25: #{tpu_custom_call.1} parent=5 // pred_check
        %p225 = pneg %p224
      $region26: #{tpu_custom_call.1} parent=5 // pred_check_branch
        %227 = sbr.rel (%p225) target = $region28
      $region27: #{tpu_custom_call.1} parent=5 // pred_region
        // Predicated region
        $region29: #{tpu_custom_call.1} parent=27 // pred_check
          %p228 = pneg %p94
        $region30: #{tpu_custom_call.1} parent=27 // pred_check_branch
          %230 = sbr.rel (%p228) target = $region32
        $region31: #{tpu_custom_call.1} parent=27 // pred_region
          %s231 = smul.u32 16, %s23
          %p232 = scmp.lt.s32.totalorder %s231, 31
          %s233 = scalar_select %p232, %s231, 31
          %s234 = smul.addr %s233, 8
          %s235 = scalar_lea.vmem %s2, %s234
          %s236 = smul.u32 16, %s23
        $region32: #{tpu_custom_call.1} parent=27 // pred_fallthru
          _
        // Predicated region
        $region33: #{tpu_custom_call.1} parent=27 // pred_check
          %p237 = pneg %p146
        $region34: #{tpu_custom_call.1} parent=27 // pred_check_branch
          %239 = sbr.rel (%p237) target = $region36
        $region35: #{tpu_custom_call.1} parent=27 // pred_region
          %p240 = scmp.lt.s32.totalorder %s23, 1
          %s241 = scalar_select %p240, %s23, 1
          %s242 = scalar_lea.vmem %s4, %s241
        $region36: #{tpu_custom_call.1} parent=27 // pred_fallthru
          _
      $region28: #{tpu_custom_call.1} parent=5 // pred_fallthru
        _
      %p243 = scmp.le.s32.totalorder 1, %s15
      %p244 = scmp.lt.s32.totalorder %s15, 3
      %p245 = pnand %p243, %p244
      %p246 = pneg %p245
      // Predicated region
      $region37: #{tpu_custom_call.1} parent=5 // pred_check
        _
      $region38: #{tpu_custom_call.1} parent=5 // pred_check_branch
        %248 = sbr.rel (%p245) target = $region40
      $region39: #{tpu_custom_call.1} parent=5 // pred_region
        %s249 = ssub.s32 %s15, 1
        // Predicated region
        $region41: #{tpu_custom_call.1} parent=39 // pred_check
          %p250 = pneg %p48
        $region42: #{tpu_custom_call.1} parent=39 // pred_check_branch
          %252 = sbr.rel (%p250) target = $region44
        $region43: #{tpu_custom_call.1} parent=39 // pred_region
          %253 = dma.done [#allocation4], 16
        $region44: #{tpu_custom_call.1} parent=39 // pred_fallthru
          _
        %254 = sfence
        %p255 = pneg %p48
        %p256 = pneg %p45
        %s257 = smul.u32 32, %s24
        %p258 = scmp.lt.s32.totalorder %s257, 31
        %s259 = scalar_select %p258, %s257, 31
        %s260 = smul.addr %s259, 8
        %s261 = scalar_lea.vmem %s1, %s260
        %p262 = pneg %p74
        %p263 = pneg %p71
        %s264 = smul.u32 16, %s25
        %p265 = scmp.lt.s32.totalorder %s264, 31
        %s266 = scalar_select %p265, %s264, 31
        %s267 = smul.addr %s266, 8
        %s268 = scalar_lea.vmem %s2, %s267
        %p269 = pneg %p100
        %p270 = pneg %p97
        %s271 = smul.u32 32, %s24
        %p272 = scmp.lt.s32.totalorder %s271, 31
        %s273 = scalar_select %p272, %s271, 31
        %s274 = smul.addr %s273, 8
        %s275 = scalar_lea.vmem %s3, %s274
        %p276 = pneg %p126
        %p277 = pneg %p123
        %p278 = scmp.lt.s32.totalorder %s25, 1
        %s279 = scalar_select %p278, %s25, 1
        %s280 = scalar_lea.vmem %s4, %s279
        %p281 = pneg %p152
        %p282 = pneg %p149
        %p283 = pneg %p180
        %p284 = pneg %p177
        %s285 = sand.u32 %s167, 1
        %s286 = scalar_lea.sflag [#allocation3], %s285
        %s287 = sand.u32 %s167, 1
        %s288 = smul.addr %s287, 256
        %s289 = scalar_lea.vmem [#allocation5], %s288
        %s290 = smul.u32 32, %s24
        %p291 = scmp.lt.s32.totalorder %s290, 31
        %s292 = scalar_select %p291, %s290, 31
        %s293 = smul.addr %s292, 8
        %s294 = scalar_lea.vmem %s1, %s293
        %s295 = smul.u32 32, %s24
        %s296 = smul.u32 16, %s25
        %p297 = scmp.lt.s32.totalorder %s296, 31
        %s298 = scalar_select %p297, %s296, 31
        %s299 = smul.addr %s298, 8
        %s300 = scalar_lea.vmem %s2, %s299
        %s301 = smul.u32 16, %s25
        %s302 = smul.u32 32, %s24
        %p303 = scmp.lt.s32.totalorder %s302, 31
        %s304 = scalar_select %p303, %s302, 31
        %s305 = smul.addr %s304, 8
        %s306 = scalar_lea.vmem %s3, %s305
        %s307 = smul.u32 32, %s24
        %p308 = scmp.lt.s32.totalorder %s25, 1
        %s309 = scalar_select %p308, %s25, 1
        %s310 = scalar_lea.vmem %s4, %s309
        %s311 = smul.u32 32, %s24
        %v312 = vld [vmem:[%s294] sm:$0xff]
        %v313 = vld [vmem:[%s294 + $0x8] sm:$0xff]
        %v314 = vld [vmem:[%s294 + $0x10] sm:$0xff]
        %v315 = vld [vmem:[%s294 + $0x18] sm:$0xff]
        %v316 = vld [vmem:[%s294 + $0x20] sm:$0xff]
        %v317 = vld [vmem:[%s294 + $0x28] sm:$0xff]
        %v318 = vld [vmem:[%s294 + $0x30] sm:$0xff]
        %v319 = vld [vmem:[%s294 + $0x38] sm:$0xff]
        %v320 = vld [vmem:[%s294 + $0x40] sm:$0xff]
        %v321 = vld [vmem:[%s294 + $0x48] sm:$0xff]
        %v322 = vld [vmem:[%s294 + $0x50] sm:$0xff]
        %v323 = vld [vmem:[%s294 + $0x58] sm:$0xff]
        %v324 = vld [vmem:[%s294 + $0x60] sm:$0xff]
        %v325 = vld [vmem:[%s294 + $0x68] sm:$0xff]
        %v326 = vld [vmem:[%s294 + $0x70] sm:$0xff]
        %v327 = vld [vmem:[%s294 + $0x78] sm:$0xff]
        %v328 = vld [vmem:[%s294 + $0x80] sm:$0xff]
        %v329 = vld [vmem:[%s294 + $0x88] sm:$0xff]
        %v330 = vld [vmem:[%s294 + $0x90] sm:$0xff]
        %v331 = vld [vmem:[%s294 + $0x98] sm:$0xff]
        %v332 = vld [vmem:[%s294 + $0xa0] sm:$0xff]
        %v333 = vld [vmem:[%s294 + $0xa8] sm:$0xff]
        %v334 = vld [vmem:[%s294 + $0xb0] sm:$0xff]
        %v335 = vld [vmem:[%s294 + $0xb8] sm:$0xff]
        %v336 = vld [vmem:[%s294 + $0xc0] sm:$0xff]
        %v337 = vld [vmem:[%s294 + $0xc8] sm:$0xff]
        %v338 = vld [vmem:[%s294 + $0xd0] sm:$0xff]
        %v339 = vld [vmem:[%s294 + $0xd8] sm:$0xff]
        %v340 = vld [vmem:[%s294 + $0xe0] sm:$0xff]
        %v341 = vld [vmem:[%s294 + $0xe8] sm:$0xff]
        %v342 = vld [vmem:[%s294 + $0xf0] sm:$0xff]
        %v343 = vld [vmem:[%s294 + $0xf8] sm:$0xff]
        %v344 = vld [vmem:[%s300] sm:$0xff]
        %v345 = vld [vmem:[%s300 + $0x8] sm:$0xff]
        %v346 = vld [vmem:[%s300 + $0x10] sm:$0xff]
        %v347 = vld [vmem:[%s300 + $0x18] sm:$0xff]
        %v348 = vld [vmem:[%s300 + $0x20] sm:$0xff]
        %v349 = vld [vmem:[%s300 + $0x28] sm:$0xff]
        %v350 = vld [vmem:[%s300 + $0x30] sm:$0xff]
        %v351 = vld [vmem:[%s300 + $0x38] sm:$0xff]
        %v352 = vld [vmem:[%s300 + $0x40] sm:$0xff]
        %v353 = vld [vmem:[%s300 + $0x48] sm:$0xff]
        %v354 = vld [vmem:[%s300 + $0x50] sm:$0xff]
        %v355 = vld [vmem:[%s300 + $0x58] sm:$0xff]
        %v356 = vld [vmem:[%s300 + $0x60] sm:$0xff]
        %v357 = vld [vmem:[%s300 + $0x68] sm:$0xff]
        %v358 = vld [vmem:[%s300 + $0x70] sm:$0xff]
        %v359 = vld [vmem:[%s300 + $0x78] sm:$0xff]
        %vm360 = vcmask 64512
        %v362 = vsel %vm360, %v312, 0
        %v365 = vsel %vm360, %v313, 0
        %v368 = vsel %vm360, %v314, 0
        %v371 = vsel %vm360, %v315, 0
        %v374 = vsel %vm360, %v316, 0
        %v377 = vsel %vm360, %v317, 0
        %v380 = vsel %vm360, %v318, 0
        %v383 = vsel %vm360, %v319, 0
        %v386 = vsel %vm360, %v320, 0
        %v389 = vsel %vm360, %v321, 0
        %v392 = vsel %vm360, %v322, 0
        %v395 = vsel %vm360, %v323, 0
        %v398 = vsel %vm360, %v324, 0
        %v401 = vsel %vm360, %v325, 0
        %v404 = vsel %vm360, %v326, 0
        %v407 = vsel %vm360, %v327, 0
        %v410 = vsel %vm360, %v328, 0
        %v413 = vsel %vm360, %v329, 0
        %v416 = vsel %vm360, %v330, 0
        %v419 = vsel %vm360, %v331, 0
        %v422 = vsel %vm360, %v332, 0
        %v425 = vsel %vm360, %v333, 0
        %v428 = vsel %vm360, %v334, 0
        %v431 = vsel %vm360, %v335, 0
        %v434 = vsel %vm360, %v336, 0
        %v437 = vsel %vm360, %v337, 0
        %v440 = vsel %vm360, %v338, 0
        %v443 = vsel %vm360, %v339, 0
        %v446 = vsel %vm360, %v340, 0
        %v449 = vsel %vm360, %v341, 0
        %v452 = vsel %vm360, %v342, 0
        %v455 = vsel %vm360, %v343, 0
        %v458 = vsel %vm360, %v344, 0
        %v461 = vsel %vm360, %v345, 0
        %v464 = vsel %vm360, %v346, 0
        %v467 = vsel %vm360, %v347, 0
        %v470 = vsel %vm360, %v348, 0
        %v473 = vsel %vm360, %v349, 0
        %v476 = vsel %vm360, %v350, 0
        %v479 = vsel %vm360, %v351, 0
        %v482 = vsel %vm360, %v352, 0
        %v485 = vsel %vm360, %v353, 0
        %v488 = vsel %vm360, %v354, 0
        %v491 = vsel %vm360, %v355, 0
        %v494 = vsel %vm360, %v356, 0
        %v497 = vsel %vm360, %v357, 0
        %v500 = vsel %vm360, %v358, 0
        %v503 = vsel %vm360, %v359, 0
        %505 = vmatprep.subr.mxu0 0.0
        %506 = vmatpush1.xpose.msra.mxu0 %v458
        %507 = vmatprep.subr.mxu0 0.0
        %508 = vmatpush1.xpose.msra.mxu0 %v461
        %509 = vmatprep.subr.mxu0 0.0
        %510 = vmatpush1.xpose.msra.mxu0 %v464
        %511 = vmatprep.subr.mxu0 0.0
        %512 = vmatpush1.xpose.msra.mxu0 %v467
        %513 = vmatprep.subr.mxu0 0.0
        %514 = vmatpush1.xpose.msra.mxu0 %v470
        %515 = vmatprep.subr.mxu0 0.0
        %516 = vmatpush1.xpose.msra.mxu0 %v473
        %517 = vmatprep.subr.mxu0 0.0
        %518 = vmatpush1.xpose.msra.mxu0 %v476
        %519 = vmatprep.subr.mxu0 0.0
        %520 = vmatpush1.xpose.msra.mxu0 %v479
        %521 = vmatprep.subr.mxu0 0.0
        %522 = vmatpush1.xpose.msra.mxu0 %v482
        %523 = vmatprep.subr.mxu0 0.0
        %524 = vmatpush1.xpose.msra.mxu0 %v485
        %525 = vmatprep.subr.mxu0 0.0
        %526 = vmatpush1.xpose.msra.mxu0 %v488
        %527 = vmatprep.subr.mxu0 0.0
        %528 = vmatpush1.xpose.msra.mxu0 %v491
        %529 = vmatprep.subr.mxu0 0.0
        %530 = vmatpush1.xpose.msra.mxu0 %v494
        %531 = vmatprep.subr.mxu0 0.0
        %532 = vmatpush1.xpose.msra.mxu0 %v497
        %533 = vmatprep.subr.mxu0 0.0
        %534 = vmatpush1.xpose.msra.mxu0 %v500
        %535 = vmatprep.subr.mxu0 0.0
        %536 = vmatpush1.xpose.msra.mxu0 %v503
        %537 = vmatprep.subr.mxu0 0.0
        %538 = vmatpush1.xpose.msra.mxu0 0.0
        %539 = vmatprep.subr.mxu0 0.0
        %540 = vmatpush1.xpose.msra.mxu0 0.0
        %541 = vmatprep.subr.mxu0 0.0
        %542 = vmatpush1.xpose.msra.mxu0 0.0
        %543 = vmatprep.subr.mxu0 0.0
        %544 = vmatpush1.xpose.msra.mxu0 0.0
        %545 = vmatprep.subr.mxu0 0.0
        %546 = vmatpush1.xpose.msra.mxu0 0.0
        %547 = vmatprep.subr.mxu0 0.0
        %548 = vmatpush1.xpose.msra.mxu0 0.0
        %549 = vmatprep.subr.mxu0 0.0
        %550 = vmatpush1.xpose.msra.mxu0 0.0
        %551 = vmatprep.subr.mxu0 0.0
        %552 = vmatpush1.xpose.msra.mxu0 0.0
        %553 = vmatprep.subr.mxu0 0.0
        %554 = vmatpush1.xpose.msra.mxu0 0.0
        %555 = vmatprep.subr.mxu0 0.0
        %556 = vmatpush1.xpose.msra.mxu0 0.0
        %557 = vmatprep.subr.mxu0 0.0
        %558 = vmatpush1.xpose.msra.mxu0 0.0
        %559 = vmatprep.subr.mxu0 0.0
        %560 = vmatpush1.xpose.msra.mxu0 0.0
        %561 = vmatprep.subr.mxu0 0.0
        %562 = vmatpush1.xpose.msra.mxu0 0.0
        %563 = vmatprep.subr.mxu0 0.0
        %564 = vmatpush1.xpose.msra.mxu0 0.0
        %565 = vmatprep.subr.mxu0 0.0
        %566 = vmatpush1.xpose.msra.mxu0 0.0
        %567 = vmatprep.subr.mxu0 0.0
        %568 = vmatpush1.xpose.msra.mxu0 0.0
        %569 = vmatprep.mubr.f32.mxu0 0.0
        %570 = vmatmul.mubr.f32.gmra.mrb[0].mxu0 %v362
        %v571 = vpop.f32.mrb[0].mxu0
        %v572 = vadd.f32 0.0, %v571
        %v573 = vpop.f32.mrb[0].mxu0
        %574 = vmatprep.mubr.f32.mxu0 0.0
        %575 = vmatmul.mubr.f32.gmra.mrb[0].mxu0 %v365
        %v576 = vpop.f32.mrb[0].mxu0
        %v577 = vadd.f32 0.0, %v576
        %v578 = vpop.f32.mrb[0].mxu0
        %579 = vmatprep.mubr.f32.mxu0 0.0
        %580 = vmatmul.mubr.f32.gmra.mrb[0].mxu0 %v368
        %v581 = vpop.f32.mrb[0].mxu0
        %v582 = vadd.f32 0.0, %v581
        %v583 = vpop.f32.mrb[0].mxu0
        %584 = vmatprep.mubr.f32.mxu0 0.0
        %585 = vmatmul.mubr.f32.gmra.mrb[0].mxu0 %v371
        %v586 = vpop.f32.mrb[0].mxu0
        %v587 = vadd.f32 0.0, %v586
        %v588 = vpop.f32.mrb[0].mxu0
        %589 = vmatprep.mubr.f32.mxu0 0.0
        %590 = vmatmul.mubr.f32.gmra.mrb[0].mxu0 %v374
        %v591 = vpop.f32.mrb[0].mxu0
        %v592 = vadd.f32 0.0, %v591
        %v593 = vpop.f32.mrb[0].mxu0
        %594 = vmatprep.mubr.f32.mxu0 0.0
        %595 = vmatmul.mubr.f32.gmra.mrb[0].mxu0 %v377
        %v596 = vpop.f32.mrb[0].mxu0
        %v597 = vadd.f32 0.0, %v596
        %v598 = vpop.f32.mrb[0].mxu0
        %599 = vmatprep.mubr.f32.mxu0 0.0
        %600 = vmatmul.mubr.f32.gmra.mrb[0].mxu0 %v380
        %v601 = vpop.f32.mrb[0].mxu0
        %v602 = vadd.f32 0.0, %v601
        %v603 = vpop.f32.mrb[0].mxu0
        %604 = vmatprep.mubr.f32.mxu0 0.0
        %605 = vmatmul.mubr.f32.gmra.mrb[0].mxu0 %v383
        %v606 = vpop.f32.mrb[0].mxu0
        %v607 = vadd.f32 0.0, %v606
        %v608 = vpop.f32.mrb[0].mxu0
        %609 = vmatprep.mubr.f32.mxu0 0.0
        %610 = vmatmul.mubr.f32.gmra.mrb[0].mxu0 %v386
        %v611 = vpop.f32.mrb[0].mxu0
        %v612 = vadd.f32 0.0, %v611
        %v613 = vpop.f32.mrb[0].mxu0
        %614 = vmatprep.mubr.f32.mxu0 0.0
        %615 = vmatmul.mubr.f32.gmra.mrb[0].mxu0 %v389
        %v616 = vpop.f32.mrb[0].mxu0
        %v617 = vadd.f32 0.0, %v616
        %v618 = vpop.f32.mrb[0].mxu0
        %619 = vmatprep.mubr.f32.mxu0 0.0
        %620 = vmatmul.mubr.f32.gmra.mrb[0].mxu0 %v392
        %v621 = vpop.f32.mrb[0].mxu0
        %v622 = vadd.f32 0.0, %v621
        %v623 = vpop.f32.mrb[0].mxu0
        %624 = vmatprep.mubr.f32.mxu0 0.0
        %625 = vmatmul.mubr.f32.gmra.mrb[0].mxu0 %v395
        %v626 = vpop.f32.mrb[0].mxu0
        %v627 = vadd.f32 0.0, %v626
        %v628 = vpop.f32.mrb[0].mxu0
        %629 = vmatprep.mubr.f32.mxu0 0.0
        %630 = vmatmul.mubr.f32.gmra.mrb[0].mxu0 %v398
        %v631 = vpop.f32.mrb[0].mxu0
        %v632 = vadd.f32 0.0, %v631
        %v633 = vpop.f32.mrb[0].mxu0
        %634 = vmatprep.mubr.f32.mxu0 0.0
        %635 = vmatmul.mubr.f32.gmra.mrb[0].mxu0 %v401
        %v636 = vpop.f32.mrb[0].mxu0
        %v637 = vadd.f32 0.0, %v636
        %v638 = vpop.f32.mrb[0].mxu0
        %639 = vmatprep.mubr.f32.mxu0 0.0
        %640 = vmatmul.mubr.f32.gmra.mrb[0].mxu0 %v404
        %v641 = vpop.f32.mrb[0].mxu0
        %v642 = vadd.f32 0.0, %v641
        %v643 = vpop.f32.mrb[0].mxu0
        %644 = vmatprep.mubr.f32.mxu0 0.0
        %645 = vmatmul.mubr.f32.gmra.mrb[0].mxu0 %v407
        %v646 = vpop.f32.mrb[0].mxu0
        %v647 = vadd.f32 0.0, %v646
        %v648 = vpop.f32.mrb[0].mxu0
        %649 = vmatprep.mubr.f32.mxu0 0.0
        %650 = vmatmul.mubr.f32.gmra.mrb[0].mxu0 %v410
        %v651 = vpop.f32.mrb[0].mxu0
        %v652 = vadd.f32 0.0, %v651
        %v653 = vpop.f32.mrb[0].mxu0
        %654 = vmatprep.mubr.f32.mxu0 0.0
        %655 = vmatmul.mubr.f32.gmra.mrb[0].mxu0 %v413
        %v656 = vpop.f32.mrb[0].mxu0
        %v657 = vadd.f32 0.0, %v656
        %v658 = vpop.f32.mrb[0].mxu0
        %659 = vmatprep.mubr.f32.mxu0 0.0
        %660 = vmatmul.mubr.f32.gmra.mrb[0].mxu0 %v416
        %v661 = vpop.f32.mrb[0].mxu0
        %v662 = vadd.f32 0.0, %v661
        %v663 = vpop.f32.mrb[0].mxu0
        %664 = vmatprep.mubr.f32.mxu0 0.0
        %665 = vmatmul.mubr.f32.gmra.mrb[0].mxu0 %v419
        %v666 = vpop.f32.mrb[0].mxu0
        %v667 = vadd.f32 0.0, %v666
        %v668 = vpop.f32.mrb[0].mxu0
        %669 = vmatprep.mubr.f32.mxu0 0.0
        %670 = vmatmul.mubr.f32.gmra.mrb[0].mxu0 %v422
        %v671 = vpop.f32.mrb[0].mxu0
        %v672 = vadd.f32 0.0, %v671
        %v673 = vpop.f32.mrb[0].mxu0
        %674 = vmatprep.mubr.f32.mxu0 0.0
        %675 = vmatmul.mubr.f32.gmra.mrb[0].mxu0 %v425
        %v676 = vpop.f32.mrb[0].mxu0
        %v677 = vadd.f32 0.0, %v676
        %v678 = vpop.f32.mrb[0].mxu0
        %679 = vmatprep.mubr.f32.mxu0 0.0
        %680 = vmatmul.mubr.f32.gmra.mrb[0].mxu0 %v428
        %v681 = vpop.f32.mrb[0].mxu0
        %v682 = vadd.f32 0.0, %v681
        %v683 = vpop.f32.mrb[0].mxu0
        %684 = vmatprep.mubr.f32.mxu0 0.0
        %685 = vmatmul.mubr.f32.gmra.mrb[0].mxu0 %v431
        %v686 = vpop.f32.mrb[0].mxu0
        %v687 = vadd.f32 0.0, %v686
        %v688 = vpop.f32.mrb[0].mxu0
        %689 = vmatprep.mubr.f32.mxu0 0.0
        %690 = vmatmul.mubr.f32.gmra.mrb[0].mxu0 %v434
        %v691 = vpop.f32.mrb[0].mxu0
        %v692 = vadd.f32 0.0, %v691
        %v693 = vpop.f32.mrb[0].mxu0
        %694 = vmatprep.mubr.f32.mxu0 0.0
        %695 = vmatmul.mubr.f32.gmra.mrb[0].mxu0 %v437
        %v696 = vpop.f32.mrb[0].mxu0
        %v697 = vadd.f32 0.0, %v696
        %v698 = vpop.f32.mrb[0].mxu0
        %699 = vmatprep.mubr.f32.mxu0 0.0
        %700 = vmatmul.mubr.f32.gmra.mrb[0].mxu0 %v440
        %v701 = vpop.f32.mrb[0].mxu0
        %v702 = vadd.f32 0.0, %v701
        %v703 = vpop.f32.mrb[0].mxu0
        %704 = vmatprep.mubr.f32.mxu0 0.0
        %705 = vmatmul.mubr.f32.gmra.mrb[0].mxu0 %v443
        %v706 = vpop.f32.mrb[0].mxu0
        %v707 = vadd.f32 0.0, %v706
        %v708 = vpop.f32.mrb[0].mxu0
        %709 = vmatprep.mubr.f32.mxu0 0.0
        %710 = vmatmul.mubr.f32.gmra.mrb[0].mxu0 %v446
        %v711 = vpop.f32.mrb[0].mxu0
        %v712 = vadd.f32 0.0, %v711
        %v713 = vpop.f32.mrb[0].mxu0
        %714 = vmatprep.mubr.f32.mxu0 0.0
        %715 = vmatmul.mubr.f32.gmra.mrb[0].mxu0 %v449
        %v716 = vpop.f32.mrb[0].mxu0
        %v717 = vadd.f32 0.0, %v716
        %v718 = vpop.f32.mrb[0].mxu0
        %719 = vmatprep.mubr.f32.mxu0 0.0
        %720 = vmatmul.mubr.f32.gmra.mrb[0].mxu0 %v452
        %v721 = vpop.f32.mrb[0].mxu0
        %v722 = vadd.f32 0.0, %v721
        %v723 = vpop.f32.mrb[0].mxu0
        %724 = vmatprep.mubr.f32.mxu0 0.0
        %725 = vmatmul.mubr.f32.gmra.mrb[0].mxu0 %v455
        %v726 = vpop.f32.mrb[0].mxu0
        %v727 = vadd.f32 0.0, %v726
        %v728 = vpop.f32.mrb[0].mxu0
        %729 = vdwg.mxu0
        %v730 = vld [vmem:[%s306] sm:$0xff]
        %v731 = vld [vmem:[%s306 + $0x8] sm:$0xff]
        %v732 = vld [vmem:[%s306 + $0x10] sm:$0xff]
        %v733 = vld [vmem:[%s306 + $0x18] sm:$0xff]
        %v734 = vld [vmem:[%s306 + $0x20] sm:$0xff]
        %v735 = vld [vmem:[%s306 + $0x28] sm:$0xff]
        %v736 = vld [vmem:[%s306 + $0x30] sm:$0xff]
        %v737 = vld [vmem:[%s306 + $0x38] sm:$0xff]
        %v738 = vld [vmem:[%s306 + $0x40] sm:$0xff]
        %v739 = vld [vmem:[%s306 + $0x48] sm:$0xff]
        %v740 = vld [vmem:[%s306 + $0x50] sm:$0xff]
        %v741 = vld [vmem:[%s306 + $0x58] sm:$0xff]
        %v742 = vld [vmem:[%s306 + $0x60] sm:$0xff]
        %v743 = vld [vmem:[%s306 + $0x68] sm:$0xff]
        %v744 = vld [vmem:[%s306 + $0x70] sm:$0xff]
        %v745 = vld [vmem:[%s306 + $0x78] sm:$0xff]
        %v746 = vld [vmem:[%s306 + $0x80] sm:$0xff]
        %v747 = vld [vmem:[%s306 + $0x88] sm:$0xff]
        %v748 = vld [vmem:[%s306 + $0x90] sm:$0xff]
        %v749 = vld [vmem:[%s306 + $0x98] sm:$0xff]
        %v750 = vld [vmem:[%s306 + $0xa0] sm:$0xff]
        %v751 = vld [vmem:[%s306 + $0xa8] sm:$0xff]
        %v752 = vld [vmem:[%s306 + $0xb0] sm:$0xff]
        %v753 = vld [vmem:[%s306 + $0xb8] sm:$0xff]
        %v754 = vld [vmem:[%s306 + $0xc0] sm:$0xff]
        %v755 = vld [vmem:[%s306 + $0xc8] sm:$0xff]
        %v756 = vld [vmem:[%s306 + $0xd0] sm:$0xff]
        %v757 = vld [vmem:[%s306 + $0xd8] sm:$0xff]
        %v758 = vld [vmem:[%s306 + $0xe0] sm:$0xff]
        %v759 = vld [vmem:[%s306 + $0xe8] sm:$0xff]
        %v760 = vld [vmem:[%s306 + $0xf0] sm:$0xff]
        %v761 = vld [vmem:[%s306 + $0xf8] sm:$0xff]
        %v762 = vld [vmem:[%s310] sm:$0x1]
        %764 = vset.pattern.permute.xlu0 0
        %765 = vperm.xlu0 %764, %v730
        %v766 = vpop.permute.xlu0 %765
        %769 = vset.pattern.permute.xlu0 0
        %770 = vperm.xlu0 %769, %v731
        %v771 = vpop.permute.xlu0 %770
        %774 = vset.pattern.permute.xlu0 0
        %775 = vperm.xlu0 %774, %v732
        %v776 = vpop.permute.xlu0 %775
        %779 = vset.pattern.permute.xlu0 0
        %780 = vperm.xlu0 %779, %v733
        %v781 = vpop.permute.xlu0 %780
        %784 = vset.pattern.permute.xlu0 0
        %785 = vperm.xlu0 %784, %v734
        %v786 = vpop.permute.xlu0 %785
        %789 = vset.pattern.permute.xlu0 0
        %790 = vperm.xlu0 %789, %v735
        %v791 = vpop.permute.xlu0 %790
        %794 = vset.pattern.permute.xlu0 0
        %795 = vperm.xlu0 %794, %v736
        %v796 = vpop.permute.xlu0 %795
        %799 = vset.pattern.permute.xlu0 0
        %800 = vperm.xlu0 %799, %v737
        %v801 = vpop.permute.xlu0 %800
        %804 = vset.pattern.permute.xlu0 0
        %805 = vperm.xlu0 %804, %v738
        %v806 = vpop.permute.xlu0 %805
        %809 = vset.pattern.permute.xlu0 0
        %810 = vperm.xlu0 %809, %v739
        %v811 = vpop.permute.xlu0 %810
        %814 = vset.pattern.permute.xlu0 0
        %815 = vperm.xlu0 %814, %v740
        %v816 = vpop.permute.xlu0 %815
        %819 = vset.pattern.permute.xlu0 0
        %820 = vperm.xlu0 %819, %v741
        %v821 = vpop.permute.xlu0 %820
        %824 = vset.pattern.permute.xlu0 0
        %825 = vperm.xlu0 %824, %v742
        %v826 = vpop.permute.xlu0 %825
        %829 = vset.pattern.permute.xlu0 0
        %830 = vperm.xlu0 %829, %v743
        %v831 = vpop.permute.xlu0 %830
        %834 = vset.pattern.permute.xlu0 0
        %835 = vperm.xlu0 %834, %v744
        %v836 = vpop.permute.xlu0 %835
        %839 = vset.pattern.permute.xlu0 0
        %840 = vperm.xlu0 %839, %v745
        %v841 = vpop.permute.xlu0 %840
        %844 = vset.pattern.permute.xlu0 0
        %845 = vperm.xlu0 %844, %v746
        %v846 = vpop.permute.xlu0 %845
        %849 = vset.pattern.permute.xlu0 0
        %850 = vperm.xlu0 %849, %v747
        %v851 = vpop.permute.xlu0 %850
        %854 = vset.pattern.permute.xlu0 0
        %855 = vperm.xlu0 %854, %v748
        %v856 = vpop.permute.xlu0 %855
        %859 = vset.pattern.permute.xlu0 0
        %860 = vperm.xlu0 %859, %v749
        %v861 = vpop.permute.xlu0 %860
        %864 = vset.pattern.permute.xlu0 0
        %865 = vperm.xlu0 %864, %v750
        %v866 = vpop.permute.xlu0 %865
        %869 = vset.pattern.permute.xlu0 0
        %870 = vperm.xlu0 %869, %v751
        %v871 = vpop.permute.xlu0 %870
        %874 = vset.pattern.permute.xlu0 0
        %875 = vperm.xlu0 %874, %v752
        %v876 = vpop.permute.xlu0 %875
        %879 = vset.pattern.permute.xlu0 0
        %880 = vperm.xlu0 %879, %v753
        %v881 = vpop.permute.xlu0 %880
        %884 = vset.pattern.permute.xlu0 0
        %885 = vperm.xlu0 %884, %v754
        %v886 = vpop.permute.xlu0 %885
        %889 = vset.pattern.permute.xlu0 0
        %890 = vperm.xlu0 %889, %v755
        %v891 = vpop.permute.xlu0 %890
        %894 = vset.pattern.permute.xlu0 0
        %895 = vperm.xlu0 %894, %v756
        %v896 = vpop.permute.xlu0 %895
        %899 = vset.pattern.permute.xlu0 0
        %900 = vperm.xlu0 %899, %v757
        %v901 = vpop.permute.xlu0 %900
        %904 = vset.pattern.permute.xlu0 0
        %905 = vperm.xlu0 %904, %v758
        %v906 = vpop.permute.xlu0 %905
        %909 = vset.pattern.permute.xlu0 0
        %910 = vperm.xlu0 %909, %v759
        %v911 = vpop.permute.xlu0 %910
        %914 = vset.pattern.permute.xlu0 0
        %915 = vperm.xlu0 %914, %v760
        %v916 = vpop.permute.xlu0 %915
        %919 = vset.pattern.permute.xlu0 0
        %920 = vperm.xlu0 %919, %v761
        %v921 = vpop.permute.xlu0 %920
        %v924 = vlaneseq
        %v925 = vshrl.u32 %v924, 7
        %v926 = vsub.s32 0, %v925
        %v927 = vrot.slane %v762, %v926
        %v929 = vadd.f32 %v766, %v927
        %v930 = vadd.f32 %v771, %v927
        %v931 = vadd.f32 %v776, %v927
        %v932 = vadd.f32 %v781, %v927
        %v933 = vadd.f32 %v786, %v927
        %v934 = vadd.f32 %v791, %v927
        %v935 = vadd.f32 %v796, %v927
        %v936 = vadd.f32 %v801, %v927
        %v937 = vadd.f32 %v806, %v927
        %v938 = vadd.f32 %v811, %v927
        %v939 = vadd.f32 %v816, %v927
        %v940 = vadd.f32 %v821, %v927
        %v941 = vadd.f32 %v826, %v927
        %v942 = vadd.f32 %v831, %v927
        %v943 = vadd.f32 %v836, %v927
        %v944 = vadd.f32 %v841, %v927
        %v945 = vadd.f32 %v846, %v927
        %v946 = vadd.f32 %v851, %v927
        %v947 = vadd.f32 %v856, %v927
        %v948 = vadd.f32 %v861, %v927
        %v949 = vadd.f32 %v866, %v927
        %v950 = vadd.f32 %v871, %v927
        %v951 = vadd.f32 %v876, %v927
        %v952 = vadd.f32 %v881, %v927
        %v953 = vadd.f32 %v886, %v927
        %v954 = vadd.f32 %v891, %v927
        %v955 = vadd.f32 %v896, %v927
        %v956 = vadd.f32 %v901, %v927
        %v957 = vadd.f32 %v906, %v927
        %v958 = vadd.f32 %v911, %v927
        %v959 = vadd.f32 %v916, %v927
        %v960 = vadd.f32 %v921, %v927
        %v961 = vadd.f32 %v929, %v572
        %v962 = vadd.f32 %v930, %v577
        %v963 = vadd.f32 %v931, %v582
        %v964 = vadd.f32 %v932, %v587
        %v965 = vadd.f32 %v933, %v592
        %v966 = vadd.f32 %v934, %v597
        %v967 = vadd.f32 %v935, %v602
        %v968 = vadd.f32 %v936, %v607
        %v969 = vadd.f32 %v937, %v612
        %v970 = vadd.f32 %v938, %v617
        %v971 = vadd.f32 %v939, %v622
        %v972 = vadd.f32 %v940, %v627
        %v973 = vadd.f32 %v941, %v632
        %v974 = vadd.f32 %v942, %v637
        %v975 = vadd.f32 %v943, %v642
        %v976 = vadd.f32 %v944, %v647
        %v977 = vadd.f32 %v945, %v652
        %v978 = vadd.f32 %v946, %v657
        %v979 = vadd.f32 %v947, %v662
        %v980 = vadd.f32 %v948, %v667
        %v981 = vadd.f32 %v949, %v672
        %v982 = vadd.f32 %v950, %v677
        %v983 = vadd.f32 %v951, %v682
        %v984 = vadd.f32 %v952, %v687
        %v985 = vadd.f32 %v953, %v692
        %v986 = vadd.f32 %v954, %v697
        %v987 = vadd.f32 %v955, %v702
        %v988 = vadd.f32 %v956, %v707
        %v989 = vadd.f32 %v957, %v712
        %v990 = vadd.f32 %v958, %v717
        %v991 = vadd.f32 %v959, %v722
        %v992 = vadd.f32 %v960, %v727
        %v993 = vmax.f32 %v961, 0.0
        %v994 = vmax.f32 %v962, 0.0
        %v995 = vmax.f32 %v963, 0.0
        %v996 = vmax.f32 %v964, 0.0
        %v997 = vmax.f32 %v965, 0.0
        %v998 = vmax.f32 %v966, 0.0
        %v999 = vmax.f32 %v967, 0.0
        %v1000 = vmax.f32 %v968, 0.0
        %v1001 = vmax.f32 %v969, 0.0
        %v1002 = vmax.f32 %v970, 0.0
        %v1003 = vmax.f32 %v971, 0.0
        %v1004 = vmax.f32 %v972, 0.0
        %v1005 = vmax.f32 %v973, 0.0
        %v1006 = vmax.f32 %v974, 0.0
        %v1007 = vmax.f32 %v975, 0.0
        %v1008 = vmax.f32 %v976, 0.0
        %v1009 = vmax.f32 %v977, 0.0
        %v1010 = vmax.f32 %v978, 0.0
        %v1011 = vmax.f32 %v979, 0.0
        %v1012 = vmax.f32 %v980, 0.0
        %v1013 = vmax.f32 %v981, 0.0
        %v1014 = vmax.f32 %v982, 0.0
        %v1015 = vmax.f32 %v983, 0.0
        %v1016 = vmax.f32 %v984, 0.0
        %v1017 = vmax.f32 %v985, 0.0
        %v1018 = vmax.f32 %v986, 0.0
        %v1019 = vmax.f32 %v987, 0.0
        %v1020 = vmax.f32 %v988, 0.0
        %v1021 = vmax.f32 %v989, 0.0
        %v1022 = vmax.f32 %v990, 0.0
        %v1023 = vmax.f32 %v991, 0.0
        %v1024 = vmax.f32 %v992, 0.0
        %s1025 = sld [smem:[#allocation2]]
        %s1026 = ssub.f32 0.0, %s1025
        %v1027 = vstv %s1026
        %v1028 = vmul.f32 %v1027, %v993
        %v1029 = vmul.f32 %v1027, %v994
        %v1030 = vmul.f32 %v1027, %v995
        %v1031 = vmul.f32 %v1027, %v996
        %v1032 = vmul.f32 %v1027, %v997
        %v1033 = vmul.f32 %v1027, %v998
        %v1034 = vmul.f32 %v1027, %v999
        %v1035 = vmul.f32 %v1027, %v1000
        %v1036 = vmul.f32 %v1027, %v1001
        %v1037 = vmul.f32 %v1027, %v1002
        %v1038 = vmul.f32 %v1027, %v1003
        %v1039 = vmul.f32 %v1027, %v1004
        %v1040 = vmul.f32 %v1027, %v1005
        %v1041 = vmul.f32 %v1027, %v1006
        %v1042 = vmul.f32 %v1027, %v1007
        %v1043 = vmul.f32 %v1027, %v1008
        %v1044 = vmul.f32 %v1027, %v1009
        %v1045 = vmul.f32 %v1027, %v1010
        %v1046 = vmul.f32 %v1027, %v1011
        %v1047 = vmul.f32 %v1027, %v1012
        %v1048 = vmul.f32 %v1027, %v1013
        %v1049 = vmul.f32 %v1027, %v1014
        %v1050 = vmul.f32 %v1027, %v1015
        %v1051 = vmul.f32 %v1027, %v1016
        %v1052 = vmul.f32 %v1027, %v1017
        %v1053 = vmul.f32 %v1027, %v1018
        %v1054 = vmul.f32 %v1027, %v1019
        %v1055 = vmul.f32 %v1027, %v1020
        %v1056 = vmul.f32 %v1027, %v1021
        %v1057 = vmul.f32 %v1027, %v1022
        %v1058 = vmul.f32 %v1027, %v1023
        %v1059 = vmul.f32 %v1027, %v1024
        %v1060 = vmul.f32 %v1028, 1.442695
        %v1061 = vpow.pop %v1060
        %v1062 = vmul.f32 %v1029, 1.442695
        %v1063 = vpow.pop %v1062
        %v1064 = vmul.f32 %v1030, 1.442695
        %v1065 = vpow.pop %v1064
        %v1066 = vmul.f32 %v1031, 1.442695
        %v1067 = vpow.pop %v1066
        %v1068 = vmul.f32 %v1032, 1.442695
        %v1069 = vpow.pop %v1068
        %v1070 = vmul.f32 %v1033, 1.442695
        %v1071 = vpow.pop %v1070
        %v1072 = vmul.f32 %v1034, 1.442695
        %v1073 = vpow.pop %v1072
        %v1074 = vmul.f32 %v1035, 1.442695
        %v1075 = vpow.pop %v1074
        %v1076 = vmul.f32 %v1036, 1.442695
        %v1077 = vpow.pop %v1076
        %v1078 = vmul.f32 %v1037, 1.442695
        %v1079 = vpow.pop %v1078
        %v1080 = vmul.f32 %v1038, 1.442695
        %v1081 = vpow.pop %v1080
        %v1082 = vmul.f32 %v1039, 1.442695
        %v1083 = vpow.pop %v1082
        %v1084 = vmul.f32 %v1040, 1.442695
        %v1085 = vpow.pop %v1084
        %v1086 = vmul.f32 %v1041, 1.442695
        %v1087 = vpow.pop %v1086
        %v1088 = vmul.f32 %v1042, 1.442695
        %v1089 = vpow.pop %v1088
        %v1090 = vmul.f32 %v1043, 1.442695
        %v1091 = vpow.pop %v1090
        %v1092 = vmul.f32 %v1044, 1.442695
        %v1093 = vpow.pop %v1092
        %v1094 = vmul.f32 %v1045, 1.442695
        %v1095 = vpow.pop %v1094
        %v1096 = vmul.f32 %v1046, 1.442695
        %v1097 = vpow.pop %v1096
        %v1098 = vmul.f32 %v1047, 1.442695
        %v1099 = vpow.pop %v1098
        %v1100 = vmul.f32 %v1048, 1.442695
        %v1101 = vpow.pop %v1100
        %v1102 = vmul.f32 %v1049, 1.442695
        %v1103 = vpow.pop %v1102
        %v1104 = vmul.f32 %v1050, 1.442695
        %v1105 = vpow.pop %v1104
        %v1106 = vmul.f32 %v1051, 1.442695
        %v1107 = vpow.pop %v1106
        %v1108 = vmul.f32 %v1052, 1.442695
        %v1109 = vpow.pop %v1108
        %v1110 = vmul.f32 %v1053, 1.442695
        %v1111 = vpow.pop %v1110
        %v1112 = vmul.f32 %v1054, 1.442695
        %v1113 = vpow.pop %v1112
        %v1114 = vmul.f32 %v1055, 1.442695
        %v1115 = vpow.pop %v1114
        %v1116 = vmul.f32 %v1056, 1.442695
        %v1117 = vpow.pop %v1116
        %v1118 = vmul.f32 %v1057, 1.442695
        %v1119 = vpow.pop %v1118
        %v1120 = vmul.f32 %v1058, 1.442695
        %v1121 = vpow.pop %v1120
        %v1122 = vmul.f32 %v1059, 1.442695
        %v1123 = vpow.pop %v1122
        %s1124 = sld [smem:[#allocation2 + $0x1]]
        %s1125 = ssub.f32 0.0, %s1124
        %v1126 = vstv %s1125
        %v1127 = vmul.f32 %v1126, %v993
        %v1128 = vmul.f32 %v1126, %v994
        %v1129 = vmul.f32 %v1126, %v995
        %v1130 = vmul.f32 %v1126, %v996
        %v1131 = vmul.f32 %v1126, %v997
        %v1132 = vmul.f32 %v1126, %v998
        %v1133 = vmul.f32 %v1126, %v999
        %v1134 = vmul.f32 %v1126, %v1000
        %v1135 = vmul.f32 %v1126, %v1001
        %v1136 = vmul.f32 %v1126, %v1002
        %v1137 = vmul.f32 %v1126, %v1003
        %v1138 = vmul.f32 %v1126, %v1004
        %v1139 = vmul.f32 %v1126, %v1005
        %v1140 = vmul.f32 %v1126, %v1006
        %v1141 = vmul.f32 %v1126, %v1007
        %v1142 = vmul.f32 %v1126, %v1008
        %v1143 = vmul.f32 %v1126, %v1009
        %v1144 = vmul.f32 %v1126, %v1010
        %v1145 = vmul.f32 %v1126, %v1011
        %v1146 = vmul.f32 %v1126, %v1012
        %v1147 = vmul.f32 %v1126, %v1013
        %v1148 = vmul.f32 %v1126, %v1014
        %v1149 = vmul.f32 %v1126, %v1015
        %v1150 = vmul.f32 %v1126, %v1016
        %v1151 = vmul.f32 %v1126, %v1017
        %v1152 = vmul.f32 %v1126, %v1018
        %v1153 = vmul.f32 %v1126, %v1019
        %v1154 = vmul.f32 %v1126, %v1020
        %v1155 = vmul.f32 %v1126, %v1021
        %v1156 = vmul.f32 %v1126, %v1022
        %v1157 = vmul.f32 %v1126, %v1023
        %v1158 = vmul.f32 %v1126, %v1024
        %v1159 = vmul.f32 %v1127, 1.442695
        %v1160 = vpow.pop %v1159
        %v1161 = vmul.f32 %v1128, 1.442695
        %v1162 = vpow.pop %v1161
        %v1163 = vmul.f32 %v1129, 1.442695
        %v1164 = vpow.pop %v1163
        %v1165 = vmul.f32 %v1130, 1.442695
        %v1166 = vpow.pop %v1165
        %v1167 = vmul.f32 %v1131, 1.442695
        %v1168 = vpow.pop %v1167
        %v1169 = vmul.f32 %v1132, 1.442695
        %v1170 = vpow.pop %v1169
        %v1171 = vmul.f32 %v1133, 1.442695
        %v1172 = vpow.pop %v1171
        %v1173 = vmul.f32 %v1134, 1.442695
        %v1174 = vpow.pop %v1173
        %v1175 = vmul.f32 %v1135, 1.442695
        %v1176 = vpow.pop %v1175
        %v1177 = vmul.f32 %v1136, 1.442695
        %v1178 = vpow.pop %v1177
        %v1179 = vmul.f32 %v1137, 1.442695
        %v1180 = vpow.pop %v1179
        %v1181 = vmul.f32 %v1138, 1.442695
        %v1182 = vpow.pop %v1181
        %v1183 = vmul.f32 %v1139, 1.442695
        %v1184 = vpow.pop %v1183
        %v1185 = vmul.f32 %v1140, 1.442695
        %v1186 = vpow.pop %v1185
        %v1187 = vmul.f32 %v1141, 1.442695
        %v1188 = vpow.pop %v1187
        %v1189 = vmul.f32 %v1142, 1.442695
        %v1190 = vpow.pop %v1189
        %v1191 = vmul.f32 %v1143, 1.442695
        %v1192 = vpow.pop %v1191
        %v1193 = vmul.f32 %v1144, 1.442695
        %v1194 = vpow.pop %v1193
        %v1195 = vmul.f32 %v1145, 1.442695
        %v1196 = vpow.pop %v1195
        %v1197 = vmul.f32 %v1146, 1.442695
        %v1198 = vpow.pop %v1197
        %v1199 = vmul.f32 %v1147, 1.442695
        %v1200 = vpow.pop %v1199
        %v1201 = vmul.f32 %v1148, 1.442695
        %v1202 = vpow.pop %v1201
        %v1203 = vmul.f32 %v1149, 1.442695
        %v1204 = vpow.pop %v1203
        %v1205 = vmul.f32 %v1150, 1.442695
        %v1206 = vpow.pop %v1205
        %v1207 = vmul.f32 %v1151, 1.442695
        %v1208 = vpow.pop %v1207
        %v1209 = vmul.f32 %v1152, 1.442695
        %v1210 = vpow.pop %v1209
        %v1211 = vmul.f32 %v1153, 1.442695
        %v1212 = vpow.pop %v1211
        %v1213 = vmul.f32 %v1154, 1.442695
        %v1214 = vpow.pop %v1213
        %v1215 = vmul.f32 %v1155, 1.442695
        %v1216 = vpow.pop %v1215
        %v1217 = vmul.f32 %v1156, 1.442695
        %v1218 = vpow.pop %v1217
        %v1219 = vmul.f32 %v1157, 1.442695
        %v1220 = vpow.pop %v1219
        %v1221 = vmul.f32 %v1158, 1.442695
        %v1222 = vpow.pop %v1221
        %v1223 = vadd.f32 %v1061, %v1160
        %v1224 = vadd.f32 %v1063, %v1162
        %v1225 = vadd.f32 %v1065, %v1164
        %v1226 = vadd.f32 %v1067, %v1166
        %v1227 = vadd.f32 %v1069, %v1168
        %v1228 = vadd.f32 %v1071, %v1170
        %v1229 = vadd.f32 %v1073, %v1172
        %v1230 = vadd.f32 %v1075, %v1174
        %v1231 = vadd.f32 %v1077, %v1176
        %v1232 = vadd.f32 %v1079, %v1178
        %v1233 = vadd.f32 %v1081, %v1180
        %v1234 = vadd.f32 %v1083, %v1182
        %v1235 = vadd.f32 %v1085, %v1184
        %v1236 = vadd.f32 %v1087, %v1186
        %v1237 = vadd.f32 %v1089, %v1188
        %v1238 = vadd.f32 %v1091, %v1190
        %v1239 = vadd.f32 %v1093, %v1192
        %v1240 = vadd.f32 %v1095, %v1194
        %v1241 = vadd.f32 %v1097, %v1196
        %v1242 = vadd.f32 %v1099, %v1198
        %v1243 = vadd.f32 %v1101, %v1200
        %v1244 = vadd.f32 %v1103, %v1202
        %v1245 = vadd.f32 %v1105, %v1204
        %v1246 = vadd.f32 %v1107, %v1206
        %v1247 = vadd.f32 %v1109, %v1208
        %v1248 = vadd.f32 %v1111, %v1210
        %v1249 = vadd.f32 %v1113, %v1212
        %v1250 = vadd.f32 %v1115, %v1214
        %v1251 = vadd.f32 %v1117, %v1216
        %v1252 = vadd.f32 %v1119, %v1218
        %v1253 = vadd.f32 %v1121, %v1220
        %v1254 = vadd.f32 %v1123, %v1222
        %1255 = vst [vmem:[%s289] sm:$0xff] %v1223
        %1256 = vst [vmem:[%s289 + $0x8] sm:$0xff] %v1224
        %1257 = vst [vmem:[%s289 + $0x10] sm:$0xff] %v1225
        %1258 = vst [vmem:[%s289 + $0x18] sm:$0xff] %v1226
        %1259 = vst [vmem:[%s289 + $0x20] sm:$0xff] %v1227
        %1260 = vst [vmem:[%s289 + $0x28] sm:$0xff] %v1228
        %1261 = vst [vmem:[%s289 + $0x30] sm:$0xff] %v1229
        %1262 = vst [vmem:[%s289 + $0x38] sm:$0xff] %v1230
        %1263 = vst [vmem:[%s289 + $0x40] sm:$0xff] %v1231
        %1264 = vst [vmem:[%s289 + $0x48] sm:$0xff] %v1232
        %1265 = vst [vmem:[%s289 + $0x50] sm:$0xff] %v1233
        %1266 = vst [vmem:[%s289 + $0x58] sm:$0xff] %v1234
        %1267 = vst [vmem:[%s289 + $0x60] sm:$0xff] %v1235
        %1268 = vst [vmem:[%s289 + $0x68] sm:$0xff] %v1236
        %1269 = vst [vmem:[%s289 + $0x70] sm:$0xff] %v1237
        %1270 = vst [vmem:[%s289 + $0x78] sm:$0xff] %v1238
        %1271 = vst [vmem:[%s289 + $0x80] sm:$0xff] %v1239
        %1272 = vst [vmem:[%s289 + $0x88] sm:$0xff] %v1240
        %1273 = vst [vmem:[%s289 + $0x90] sm:$0xff] %v1241
        %1274 = vst [vmem:[%s289 + $0x98] sm:$0xff] %v1242
        %1275 = vst [vmem:[%s289 + $0xa0] sm:$0xff] %v1243
        %1276 = vst [vmem:[%s289 + $0xa8] sm:$0xff] %v1244
        %1277 = vst [vmem:[%s289 + $0xb0] sm:$0xff] %v1245
        %1278 = vst [vmem:[%s289 + $0xb8] sm:$0xff] %v1246
        %1279 = vst [vmem:[%s289 + $0xc0] sm:$0xff] %v1247
        %1280 = vst [vmem:[%s289 + $0xc8] sm:$0xff] %v1248
        %1281 = vst [vmem:[%s289 + $0xd0] sm:$0xff] %v1249
        %1282 = vst [vmem:[%s289 + $0xd8] sm:$0xff] %v1250
        %1283 = vst [vmem:[%s289 + $0xe0] sm:$0xff] %v1251
        %1284 = vst [vmem:[%s289 + $0xe8] sm:$0xff] %v1252
        %1285 = vst [vmem:[%s289 + $0xf0] sm:$0xff] %v1253
        %1286 = vst [vmem:[%s289 + $0xf8] sm:$0xff] %v1254
        %s1287 = sand.u32 %s167, 1
        %s1288 = scalar_lea.sflag [#allocation3], %s1287
        %s1289 = sand.u32 %s167, 1
        %s1290 = smul.addr %s1289, 256
        %s1291 = scalar_lea.vmem [#allocation5], %s1290
        // Predicated region
        $region45: #{tpu_custom_call.1} parent=39 // pred_check
          %p1292 = pneg %p177
        $region46: #{tpu_custom_call.1} parent=39 // pred_check_branch
          %1294 = sbr.rel (%p1292) target = $region48
        $region47: #{tpu_custom_call.1} parent=39 // pred_region
          %s1295 = smul.u32 32, %s24
          %s1297 = ssub.s32 4096, 4096
          %1298 = vsyncadd %s1288, %s1297
          %s1299 = smul.addr %s1295, 2
          %s1300 = sadd.s32 %s25, %s1299
          %s1301 = smul.addr %s1300, 128
          %s1302 = scalar_lea.hbm %s5, %s1301
          %s1303 = sshll.u32 %s1291, 4
          %s1304 = int_to_ptr.vmem [resolvable:$true] %s1303
          %1309 = dma.vmem_to_hbm [thread:$0]  %s1304, 4096, %s1302, %s1288, 128, 256, 8
        $region48: #{tpu_custom_call.1} parent=39 // pred_fallthru
          _
      $region40: #{tpu_custom_call.1} parent=5 // pred_fallthru
        _
      %p1310 = scmp.le.s32.totalorder 2, %s15
      // Predicated region
      $region49: #{tpu_custom_call.1} parent=5 // pred_check
        %p1311 = pneg %p1310
      $region50: #{tpu_custom_call.1} parent=5 // pred_check_branch
        %1313 = sbr.rel (%p1311) target = $region52
      $region51: #{tpu_custom_call.1} parent=5 // pred_region
        %s1314 = ssub.s32 %s15, 2
        // Predicated region
        $region53: #{tpu_custom_call.1} parent=51 // pred_check
          %p1315 = pneg %p183
        $region54: #{tpu_custom_call.1} parent=51 // pred_check_branch
          %1317 = sbr.rel (%p1315) target = $region56
        $region55: #{tpu_custom_call.1} parent=51 // pred_region
          %s1318 = sand.u32 %s168, 1
          %s1319 = scalar_lea.sflag [#allocation3], %s1318
          %s1320 = sand.u32 %s168, 1
          %s1321 = smul.addr %s1320, 256
          %s1322 = scalar_lea.vmem [#allocation5], %s1321
          %1323 = dma.done %s1319, 4096
        $region56: #{tpu_custom_call.1} parent=51 // pred_fallthru
          _
      $region52: #{tpu_custom_call.1} parent=5 // pred_fallthru
        _
    $region6: #{tpu_custom_call.1} parent=1 // loop_footer
      %s19 = sadd.s32 1, %s15
    $region7: #{tpu_custom_call.1} parent=1 // loop_footer_branch
      %14 = sbr.rel target = $region3
    $region8: #{tpu_custom_call.1} parent=1 // loop_exit
      _
    %1324 = vsyncpa [#allocation3], 1
    %s1325 = scalar_lea.sflag [#allocation3], 1
    %1326 = vsyncpa %s1325, 1
    %1327 = vsyncpa [#allocation4], 1
    %s1328 = scalar_lea.sflag [#allocation4], 1
    %1329 = vsyncpa %s1328, 1

</llo_original>
